<compile_context>
chip_gen: v6e
topology: v6e:2x2x1
jax: 0.10.0
libtpu: 0.0.40
codegen_flags: <defaults>
</compile_context>

<pallas_src>
import numpy as np
import jax
import jax.numpy as jnp
from jax.experimental import pallas as pl
from jax.experimental.pallas import tpu as pltpu


def _round_up(x: int, m: int) -> int:
    return ((x + m - 1) // m) * m


def make_weights(lat_dim: int, n_channels: int, n_feats: int, seed: int = 100) -> np.ndarray:
    """Deterministically reproduce ScenarioGenerator.__init__ weight construction.

    Returns (n_channels, n_feats, lat_dim) f32 — same layout as the PyTorch Linear weights.
    """
    np.random.seed(seed)
    ws = []
    for _ in range(n_channels):
        w_ = np.random.uniform(-1, 1, (n_feats, lat_dim))
        u, s, vt = np.linalg.svd(w_, full_matrices=False)
        w = u if n_feats >= lat_dim else vt
        ws.append(w.astype(np.float32))
    return np.stack(ws, axis=0)


def prepare_kernel_weights(w_stack: np.ndarray) -> jax.Array:
    """One-off init-time prep: kernel-ready weights of shape (C, L_pad, F_pad) f32.

    Each channel's (n_feats, lat_dim) weight is transposed to (lat_dim, n_feats) so the
    kernel's matmul is a plain z @ W (RHS already in (K, N) form, N on lanes), then
    zero-padded to L_pad = round_up(lat_dim, 8) sublanes and F_pad = round_up(n_feats, 128)
    lanes.  Zero-padding K and N is numerically exact.  This cost is paid once, not per call.
    """
    n_channels, n_feats, lat_dim = w_stack.shape
    l_pad = _round_up(lat_dim, 8)
    f_pad = _round_up(n_feats, 128)
    w_t = np.transpose(np.asarray(w_stack, dtype=np.float32), (0, 2, 1))  # (C, L, F)
    w_ready = np.zeros((n_channels, l_pad, f_pad), dtype=np.float32)
    w_ready[:, :lat_dim, :n_feats] = w_t
    return jnp.asarray(w_ready)


def _scenario_kernel(z_ref, w_ref, o_ref):
    # z_ref: (B_pad, L_pad); w_ref: (L_pad, F_pad) for the current channel;
    # o_ref: (B_pad, F_pad).  Single MXU push per channel, f32 accumulation,
    # lane-dense (multiple-of-128) output store, no weight relayout needed.
    o_ref[...] = jnp.dot(
        z_ref[...], w_ref[...], preferred_element_type=jnp.float32
    ).astype(o_ref.dtype)


def scenario_generator_forward(z: jax.Array, w_ready: jax.Array, n_feats: int) -> jax.Array:
    """Pallas forward.  z: (batch, lat_dim) f32; w_ready: (C, L_pad, F_pad) from
    prepare_kernel_weights.  Returns (C, batch, n_feats) f32 with out[ch] == PyTorch obs[ch].
    """
    batch, lat_dim = z.shape
    n_channels, l_pad, f_pad = w_ready.shape
    b_pad = _round_up(batch, 8)

    # Single jnp.pad, and only when actually needed (batch % 8 != 0 or lat_dim < L_pad).
    if (b_pad, l_pad) != (batch, lat_dim):
        z_in = jnp.pad(z, ((0, b_pad - batch), (0, l_pad - lat_dim)))
    else:
        z_in = z

    out = pl.pallas_call(
        _scenario_kernel,
        out_shape=jax.ShapeDtypeStruct((n_channels, b_pad, f_pad), jnp.float32),
        grid=(n_channels,),
        in_specs=[
            # z: whole (tiny) tile, invariant across the channel grid -> stays resident.
            pl.BlockSpec((b_pad, l_pad), lambda c: (0, 0)),
            # Per-channel weight tile, already (K, N) with N lane-dense.
            pl.BlockSpec((None, l_pad, f_pad), lambda c: (c, 0, 0)),
        ],
        out_specs=pl.BlockSpec((None, b_pad, f_pad), lambda c: (c, 0, 0)),
        compiler_params=pltpu.CompilerParams(
            # Channels are independent: lets the two v7x TensorCores split the grid.
            dimension_semantics=("parallel",),
        ),
    )(z_in, w_ready)

    # Single-slice epilogue: drop batch / feature padding.  Layout is already (C, B, F).
    return out[:, :batch, :n_feats]


def scenario_generator_forward_xla(z: jax.Array, w_stack: jax.Array) -> jax.Array:
    """Small-shape fallback: at ~3 KFLOPs a fused XLA einsum avoids the custom-call and
    padding overhead entirely.  Kept separate so the Pallas path can be exercised/tested."""
    return jnp.einsum("bl,cfl->cbf", z, w_stack)


# TODO(synk): if generalized to large n_feats / lat_dim, add grid axes tiling the F (N)
# and L (K) dims — 256-wide N tiles on v6e/v7x (128 on v5e), K tiles >= 256 — and size
# tiles against v7x's 64 MiB VMEM (BlockSpec double-buffers each input).


if __name__ == "__main__":
    lat_dim = 4
    n_channels = 3
    n_feats = 16
    batch = 8

    # Deterministic parameters (mirrors ScenarioGenerator.__init__ with seed=100),
    # prepared once into kernel-ready layout.
    w_stack = make_weights(lat_dim, n_channels, n_feats, seed=100)   # (C, F, L) host-side
    w_ready = prepare_kernel_weights(w_stack)                        # (C, L_pad=8, F_pad=128)

    # Deterministic input z ~ N(0, I).
    key = jax.random.PRNGKey(0)
    z = jax.random.normal(key, (batch, lat_dim), dtype=jnp.float32)

    out = scenario_generator_forward(z, w_ready, n_feats)
    out = jax.block_until_ready(out)

    # Sanity check against plain-JAX reference (same math as PyTorch Linear, no bias).
    ref = jnp.einsum("bl,cfl->cbf", z, jnp.asarray(w_stack))
    assert out.shape == (n_channels, batch, n_feats)
    assert jnp.allclose(out, ref, atol=1e-5, rtol=1e-5)

    print("KERNEL_OK")
</pallas_src>

<mosaic_0001>
module attributes {stable_mosaic.version = 11 : i64} {
  func.func @_scenario_kernel(%arg0: i32, %arg1: memref<8x8xf32, #tpu.memory_space<vmem>>, %arg2: memref<1x8x128xf32, #tpu.memory_space<vmem>>, %arg3: memref<1x8x128xf32, #tpu.memory_space<vmem>>) attributes {dimension_semantics = [#tpu.dimension_semantics<parallel>], iteration_bounds = array<i64: 3>, scalar_prefetch = 0 : i64, scratch_operands = 0 : i64, tpu.core_type = #tpu.core_type<tc>, window_params = [{pipeline_mode = #tpu.pipeline_mode<synchronous>, transform_indices = @transform_0, window_bounds = array<i64: 8, 8>}, {transform_indices = @transform_1, window_bounds = array<i64: 1, 8, 128>}, {transform_indices = @transform_2, window_bounds = array<i64: 1, 8, 128>}]} {
    %c0 = arith.constant 0 : index
    %c0_0 = arith.constant 0 : index
    %0 = vector.load %arg1[%c0, %c0_0] : memref<8x8xf32, #tpu.memory_space<vmem>>, vector<8x8xf32>
    %c0_1 = arith.constant 0 : index
    %c0_2 = arith.constant 0 : index
    %c0_3 = arith.constant 0 : index
    %1 = vector.load %arg2[%c0_1, %c0_2, %c0_3] : memref<1x8x128xf32, #tpu.memory_space<vmem>>, vector<1x8x128xf32>
    %2 = vector.shape_cast %1 : vector<1x8x128xf32> to vector<8x128xf32>
    %cst = arith.constant dense<0.000000e+00> : vector<8x128xf32>
    %3 = tpu.matmul %0, %2, %cst {dimension_numbers = #tpu.dot_dimension_numbers<[1], [0], [0], [1], [0, 0, 1, 1], [], []>} : vector<8x8xf32>, vector<8x128xf32>, vector<8x128xf32> -> vector<8x128xf32>
    %c0_4 = arith.constant 0 : index
    %c0_5 = arith.constant 0 : index
    %c0_6 = arith.constant 0 : index
    %4 = vector.load %arg3[%c0_4, %c0_5, %c0_6] : memref<1x8x128xf32, #tpu.memory_space<vmem>>, vector<1x8x128xf32>
    %5 = vector.shape_cast %4 : vector<1x8x128xf32> to vector<8x128xf32>
    %6 = vector.shape_cast %3 : vector<8x128xf32> to vector<1x8x128xf32>
    tpu.vector_store %arg3[%c0_4, %c0_5, %c0_6], %6 {strides = array<i32>} : memref<1x8x128xf32, #tpu.memory_space<vmem>>, vector<1x8x128xf32>,
    return
  }
  func.func @transform_0(%arg0: i32) -> (i32, i32) {
    %c0_i32 = arith.constant 0 : i32
    %c0_i32_0 = arith.constant 0 : i32
    %c0_i32_1 = arith.constant 0 : i32
    return %c0_i32, %c0_i32_0 : i32, i32
  }
  func.func @transform_1(%arg0: i32) -> (i32, i32, i32) {
    %c0_i32 = arith.constant 0 : i32
    %c0_i32_0 = arith.constant 0 : i32
    %c0_i32_1 = arith.constant 0 : i32
    return %arg0, %c0_i32, %c0_i32_0 : i32, i32, i32
  }
  func.func @transform_2(%arg0: i32) -> (i32, i32, i32) {
    %c0_i32 = arith.constant 0 : i32
    %c0_i32_0 = arith.constant 0 : i32
    %c0_i32_1 = arith.constant 0 : i32
    return %arg0, %c0_i32, %c0_i32_0 : i32, i32, i32
  }
}

</mosaic_0001>

<llo_original>
// kernel: tpu_custom_call.1
$region0: #{tpu_custom_call.1}
  #allocation0 [shape = 'u32[]', space=smem, size = 0x4, offset = 0x4, fixed_abs, tag = 'smem constant byte address 0x4 - core index']
  #allocation1 [shape = 'u32[144,128]{1,0:T(1,128)}', space=vmem, size = 0x12000, scoped, tag = 'internal scratch']
  %s0 = inlined_call_operand.hbm [shape: f32[8,8], index: 0, kind: input, shape index: {}]
  %s1 = inlined_call_operand.hbm [shape: f32[3,8,128], index: 1, kind: input, shape index: {}]
  %s2 = inlined_call_operand.hbm [shape: f32[3,8,128], index: 2, kind: output, shape index: {}]
  %s3 = sld [smem:[#allocation0]]
  $region49: #{tpu_custom_call.1} parent=0
    _
  %s5 = ssub.s32 1, %s3
  %s6 = scalar_select 0, %s5, %s3
  $region1: #{tpu_custom_call.1} parent=0
    #allocation2 [shape = 'u8[4096]{0}', space=vmem, size = 0x1000, scoped, tag = 'input window, operand 0, single buffered']
    #allocation3 [shape = 's32[2]{0}', space=sflag, size = 0x8, scoped, tag = 'scoped memory for tpu_custom_call.1']
    #allocation4 [shape = 's32[2]{0}', space=sflag, size = 0x8, scoped, tag = 'scoped memory for tpu_custom_call.1']
    #allocation5 [shape = 'u8[8192]{0}', space=vmem, size = 0x2000, scoped, tag = 'input window, operand 1']
    #allocation6 [shape = 's32[2]{0}', space=sflag, size = 0x8, scoped, tag = 'scoped memory for tpu_custom_call.1']
    #allocation7 [shape = 'u8[8192]{0}', space=vmem, size = 0x2000, scoped, tag = 'output window, operand 0']
    %7 = vsyncpa [#allocation3], 0
    %8 = vsyncpa [#allocation6], 0
    %s9 = scalar_lea.sflag [#allocation6], 1
    %10 = vsyncpa %s9, 0
    %11 = vsyncpa [#allocation4], 0
    %s12 = scalar_lea.sflag [#allocation4], 1
    %13 = vsyncpa %s12, 0
    loop: start=0, step=1, limit=5
    $region2: #{tpu_custom_call.1} parent=1 // loop_pre_header
      _
    $region3: #{tpu_custom_call.1} parent=1 // loop_header
      %s15 = sphi 0, %s19
      %p16 = scmp.ge.s32.totalorder %s15, 5
      %s23 = sphi 0, %s23
      %s25 = sphi 0, %s23
      %s26 = sphi 0, %s25
      %s40 = sphi 0, %s26
      %s46 = sphi 0, %s48
      %s49 = sphi 0, %s46
      %s50 = sphi 0, %s49
      %s66 = sphi 0, %s50
      %s72 = sphi 0, %s74
      %s75 = sphi 0, %s72
      %s76 = sphi 0, %s75
      %s92 = sphi 0, %s76
    $region4: #{tpu_custom_call.1} parent=1 // loop_header_branch
      %18 = sbr.rel (%p16) target = $region8
    $region5: #{tpu_custom_call.1} parent=1 // loop_body
      %s20 = ssub.s32 %s15, 1
      %s21 = ssub.s32 %s15, 2
      %s22 = sadd.s32 %s15, 1
      %s24 = sadd.s32 %s23, 1
      %p27 = scmp.eq.s32.totalorder %s15, 2
      %p28 = scmp.ne.s32.totalorder %s23, %s25
      %p29 = scmp.eq.s32.totalorder %s15, 0
      %p30 = por %p28, %p29
      %p31 = scmp.ne.s32.totalorder %s23, %s25
      %p32 = scmp.eq.s32.totalorder %s20, 2
      %p33 = por %p31, %p32
      %p34 = scmp.ne.s32.totalorder %s25, %s26
      %p35 = scmp.eq.s32.totalorder %s20, 0
      %p36 = por %p34, %p35
      %p37 = scmp.ne.s32.totalorder %s25, %s26
      %p38 = scmp.eq.s32.totalorder %s21, 2
      %p39 = por %p37, %p38
      %p41 = scmp.ne.s32.totalorder %s26, %s40
      %p42 = scmp.eq.s32.totalorder %s21, 0
      %p43 = por %p41, %p42
      %s44 = ssub.s32 %s15, %s22
      %p45 = scmp.eq.s32.totalorder %s44, 0
      %s47 = sadd.s32 %s46, 1
      %s48 = scalar_select %p45, %s46, %s47
      %p51 = pneg %p45
      %p52 = scmp.eq.s32.totalorder %s15, 2
      %p53 = por %p51, %p52
      %p54 = scmp.ne.s32.totalorder %s46, %s49
      %p55 = scmp.eq.s32.totalorder %s15, 0
      %p56 = por %p54, %p55
      %p57 = scmp.ne.s32.totalorder %s46, %s49
      %p58 = scmp.eq.s32.totalorder %s20, 2
      %p59 = por %p57, %p58
      %p60 = scmp.ne.s32.totalorder %s49, %s50
      %p61 = scmp.eq.s32.totalorder %s20, 0
      %p62 = por %p60, %p61
      %p63 = scmp.ne.s32.totalorder %s49, %s50
      %p64 = scmp.eq.s32.totalorder %s21, 2
      %p65 = por %p63, %p64
      %p67 = scmp.ne.s32.totalorder %s50, %s66
      %p68 = scmp.eq.s32.totalorder %s21, 0
      %p69 = por %p67, %p68
      %s70 = ssub.s32 %s15, %s22
      %p71 = scmp.eq.s32.totalorder %s70, 0
      %s73 = sadd.s32 %s72, 1
      %s74 = scalar_select %p71, %s72, %s73
      %p77 = pneg %p71
      %p78 = scmp.eq.s32.totalorder %s15, 2
      %p79 = por %p77, %p78
      %p80 = scmp.ne.s32.totalorder %s72, %s75
      %p81 = scmp.eq.s32.totalorder %s15, 0
      %p82 = por %p80, %p81
      %p83 = scmp.ne.s32.totalorder %s72, %s75
      %p84 = scmp.eq.s32.totalorder %s20, 2
      %p85 = por %p83, %p84
      %p86 = scmp.ne.s32.totalorder %s75, %s76
      %p87 = scmp.eq.s32.totalorder %s20, 0
      %p88 = por %p86, %p87
      %p89 = scmp.ne.s32.totalorder %s75, %s76
      %p90 = scmp.eq.s32.totalorder %s21, 2
      %p91 = por %p89, %p90
      %p93 = scmp.ne.s32.totalorder %s76, %s92
      %p94 = scmp.eq.s32.totalorder %s21, 0
      %p95 = por %p93, %p94
      %p96 = scmp.le.s32.totalorder 1, %s15
      %p97 = scmp.lt.s32.totalorder %s15, 4
      %p98 = pnand %p96, %p97
      %p99 = pneg %p98
      // Predicated region
      $region9: #{tpu_custom_call.1} parent=5 // pred_check
        _
      $region10: #{tpu_custom_call.1} parent=5 // pred_check_branch
        %101 = sbr.rel (%p98) target = $region12
      $region11: #{tpu_custom_call.1} parent=5 // pred_region
        %s102 = ssub.s32 %s15, 1
        // Predicated region
        $region13: #{tpu_custom_call.1} parent=11 // pred_check
          %p103 = pneg %p36
        $region14: #{tpu_custom_call.1} parent=11 // pred_check_branch
          %105 = sbr.rel (%p103) target = $region16
        $region15: #{tpu_custom_call.1} parent=11 // pred_region
          %s107 = ssub.s32 128, 128
          %108 = vsyncadd [#allocation3], %s107
          %s110 = sshll.u32 [#allocation2], 4
          %s111 = int_to_ptr.vmem [resolvable:$true] %s110
          %113 = dma.hbm_to_vmem [thread:$0]  %s0, 128, %s111, [#allocation3]
        $region16: #{tpu_custom_call.1} parent=11 // pred_fallthru
          _
      $region12: #{tpu_custom_call.1} parent=5 // pred_fallthru
        _
      %p114 = scmp.lt.s32.totalorder %s15, 3
      // Predicated region
      $region17: #{tpu_custom_call.1} parent=5 // pred_check
        %p115 = pneg %p114
      $region18: #{tpu_custom_call.1} parent=5 // pred_check_branch
        %117 = sbr.rel (%p115) target = $region20
      $region19: #{tpu_custom_call.1} parent=5 // pred_region
        // Predicated region
        $region21: #{tpu_custom_call.1} parent=19 // pred_check
          %p118 = pneg %p56
        $region22: #{tpu_custom_call.1} parent=19 // pred_check_branch
          %120 = sbr.rel (%p118) target = $region24
        $region23: #{tpu_custom_call.1} parent=19 // pred_region
          %s121 = sand.u32 %s46, 1
          %s122 = scalar_lea.sflag [#allocation6], %s121
          %s123 = sand.u32 %s46, 1
          %s124 = smul.addr %s123, 8
          %s125 = scalar_lea.vmem [#allocation5], %s124
          %s127 = ssub.s32 128, 128
          %128 = vsyncadd %s122, %s127
          %s129 = smul.addr %s15, 128
          %s130 = scalar_lea.hbm %s1, %s129
          %s132 = sshll.u32 %s125, 4
          %s133 = int_to_ptr.vmem [resolvable:$true] %s132
          %135 = dma.hbm_to_vmem [thread:$0]  %s130, 128, %s133, %s122
        $region24: #{tpu_custom_call.1} parent=19 // pred_fallthru
          _
      $region20: #{tpu_custom_call.1} parent=5 // pred_fallthru
        _
      %p136 = scmp.le.s32.totalorder 1, %s15
      %p137 = scmp.lt.s32.totalorder %s15, 4
      %p138 = pnand %p136, %p137
      %p139 = pneg %p138
      // Predicated region
      $region25: #{tpu_custom_call.1} parent=5 // pred_check
        _
      $region26: #{tpu_custom_call.1} parent=5 // pred_check_branch
        %141 = sbr.rel (%p138) target = $region28
      $region27: #{tpu_custom_call.1} parent=5 // pred_region
        %s142 = ssub.s32 %s15, 1
        // Predicated region
        $region29: #{tpu_custom_call.1} parent=27 // pred_check
          %p143 = pneg %p36
        $region30: #{tpu_custom_call.1} parent=27 // pred_check_branch
          %145 = sbr.rel (%p143) target = $region32
        $region31: #{tpu_custom_call.1} parent=27 // pred_region
          %146 = dma.done [#allocation3], 128
        $region32: #{tpu_custom_call.1} parent=27 // pred_fallthru
          _
        %s147 = sand.u32 %s49, 1
        %s148 = scalar_lea.sflag [#allocation6], %s147
        %s149 = sand.u32 %s49, 1
        %s150 = smul.addr %s149, 8
        %s151 = scalar_lea.vmem [#allocation5], %s150
        // Predicated region
        $region33: #{tpu_custom_call.1} parent=27 // pred_check
          %p152 = pneg %p62
        $region34: #{tpu_custom_call.1} parent=27 // pred_check_branch
          %154 = sbr.rel (%p152) target = $region36
        $region35: #{tpu_custom_call.1} parent=27 // pred_region
          %155 = dma.done %s148, 128
        $region36: #{tpu_custom_call.1} parent=27 // pred_fallthru
          _
        %p156 = pneg %p36
        %p157 = pneg %p33
        %s158 = sand.u32 %s49, 1
        %s159 = scalar_lea.sflag [#allocation6], %s158
        %s160 = sand.u32 %s49, 1
        %s161 = smul.addr %s160, 8
        %s162 = scalar_lea.vmem [#allocation5], %s161
        %p163 = pneg %p62
        %p164 = pneg %p59
        %p165 = pneg %p88
        %p166 = pneg %p85
        %s167 = sand.u32 %s75, 1
        %s168 = scalar_lea.sflag [#allocation4], %s167
        %s169 = sand.u32 %s75, 1
        %s170 = smul.addr %s169, 8
        %s171 = scalar_lea.vmem [#allocation7], %s170
        %v172 = vld [vmem:[#allocation2] sm:$0xff]
        %v173 = vld [vmem:[%s151] sm:$0xff]
        %vm174 = vcmask 64512
        %v176 = vsel %vm174, %v172, 0
        %178 = vmatprep.subr.mxu0 0.0
        %179 = vmatpush1.msra.mxu0 0.0
        %180 = vmatprep.subr.mxu0 0.0
        %181 = vmatpush1.msra.mxu0 0.0
        %182 = vmatprep.subr.mxu0 0.0
        %183 = vmatpush1.msra.mxu0 0.0
        %184 = vmatprep.subr.mxu0 0.0
        %185 = vmatpush1.msra.mxu0 0.0
        %186 = vmatprep.subr.mxu0 0.0
        %187 = vmatpush1.msra.mxu0 0.0
        %188 = vmatprep.subr.mxu0 0.0
        %189 = vmatpush1.msra.mxu0 0.0
        %190 = vmatprep.subr.mxu0 0.0
        %191 = vmatpush1.msra.mxu0 0.0
        %192 = vmatprep.subr.mxu0 0.0
        %193 = vmatpush1.msra.mxu0 0.0
        %194 = vmatprep.subr.mxu0 0.0
        %195 = vmatpush1.msra.mxu0 0.0
        %196 = vmatprep.subr.mxu0 0.0
        %197 = vmatpush1.msra.mxu0 0.0
        %198 = vmatprep.subr.mxu0 0.0
        %199 = vmatpush1.msra.mxu0 0.0
        %200 = vmatprep.subr.mxu0 0.0
        %201 = vmatpush1.msra.mxu0 0.0
        %202 = vmatprep.subr.mxu0 0.0
        %203 = vmatpush1.msra.mxu0 0.0
        %204 = vmatprep.subr.mxu0 0.0
        %205 = vmatpush1.msra.mxu0 0.0
        %206 = vmatprep.subr.mxu0 0.0
        %207 = vmatpush1.msra.mxu0 0.0
        %208 = vmatprep.subr.mxu0 0.0
        %209 = vmatpush1.msra.mxu0 %v173
        %210 = vmatprep.subr.mxu0 0.0
        %211 = vmatpush2.msra.mxu0 0.0
        %212 = vmatprep.subr.mxu0 0.0
        %213 = vmatpush2.msra.mxu0 0.0
        %214 = vmatprep.subr.mxu0 0.0
        %215 = vmatpush2.msra.mxu0 0.0
        %216 = vmatprep.subr.mxu0 0.0
        %217 = vmatpush2.msra.mxu0 0.0
        %218 = vmatprep.subr.mxu0 0.0
        %219 = vmatpush2.msra.mxu0 0.0
        %220 = vmatprep.subr.mxu0 0.0
        %221 = vmatpush2.msra.mxu0 0.0
        %222 = vmatprep.subr.mxu0 0.0
        %223 = vmatpush2.msra.mxu0 0.0
        %224 = vmatprep.subr.mxu0 0.0
        %225 = vmatpush2.msra.mxu0 0.0
        %226 = vmatprep.subr.mxu0 0.0
        %227 = vmatpush2.msra.mxu0 0.0
        %228 = vmatprep.subr.mxu0 0.0
        %229 = vmatpush2.msra.mxu0 0.0
        %230 = vmatprep.subr.mxu0 0.0
        %231 = vmatpush2.msra.mxu0 0.0
        %232 = vmatprep.subr.mxu0 0.0
        %233 = vmatpush2.msra.mxu0 0.0
        %234 = vmatprep.subr.mxu0 0.0
        %235 = vmatpush2.msra.mxu0 0.0
        %236 = vmatprep.subr.mxu0 0.0
        %237 = vmatpush2.msra.mxu0 0.0
        %238 = vmatprep.subr.mxu0 0.0
        %239 = vmatpush2.msra.mxu0 0.0
        %240 = vmatprep.subr.mxu0 0.0
        %241 = vmatpush2.msra.mxu0 0.0
        %242 = vmatprep.mubr.f32.mxu0 0.0
        %243 = vmatmul.mubr.f32.gmra.mxu0 %v176
        %v244 = vpop.f32.mrf.mxu0
        %v245 = vadd.f32 0.0, %v244
        %v246 = vpop.f32.mrf.mxu0
        %247 = vdwg.mxu0
        %248 = vst [vmem:[%s171] sm:$0xff] %v245
        %s249 = sand.u32 %s75, 1
        %s250 = scalar_lea.sflag [#allocation4], %s249
        %s251 = sand.u32 %s75, 1
        %s252 = smul.addr %s251, 8
        %s253 = scalar_lea.vmem [#allocation7], %s252
        // Predicated region
        $region37: #{tpu_custom_call.1} parent=27 // pred_check
          %p254 = pneg %p85
        $region38: #{tpu_custom_call.1} parent=27 // pred_check_branch
          %256 = sbr.rel (%p254) target = $region40
        $region39: #{tpu_custom_call.1} parent=27 // pred_region
          %s258 = ssub.s32 128, 128
          %259 = vsyncadd %s250, %s258
          %s260 = smul.addr %s20, 128
          %s261 = scalar_lea.hbm %s2, %s260
          %s263 = sshll.u32 %s253, 4
          %s264 = int_to_ptr.vmem [resolvable:$true] %s263
          %266 = dma.vmem_to_hbm [thread:$0]  %s264, 128, %s261, %s250
        $region40: #{tpu_custom_call.1} parent=27 // pred_fallthru
          _
      $region28: #{tpu_custom_call.1} parent=5 // pred_fallthru
        _
      %p267 = scmp.le.s32.totalorder 2, %s15
      // Predicated region
      $region41: #{tpu_custom_call.1} parent=5 // pred_check
        %p268 = pneg %p267
      $region42: #{tpu_custom_call.1} parent=5 // pred_check_branch
        %270 = sbr.rel (%p268) target = $region44
      $region43: #{tpu_custom_call.1} parent=5 // pred_region
        %s271 = ssub.s32 %s15, 2
        // Predicated region
        $region45: #{tpu_custom_call.1} parent=43 // pred_check
          %p272 = pneg %p91
        $region46: #{tpu_custom_call.1} parent=43 // pred_check_branch
          %274 = sbr.rel (%p272) target = $region48
        $region47: #{tpu_custom_call.1} parent=43 // pred_region
          %s275 = sand.u32 %s76, 1
          %s276 = scalar_lea.sflag [#allocation4], %s275
          %s277 = sand.u32 %s76, 1
          %s278 = smul.addr %s277, 8
          %s279 = scalar_lea.vmem [#allocation7], %s278
          %280 = dma.done %s276, 128
        $region48: #{tpu_custom_call.1} parent=43 // pred_fallthru
          _
      $region44: #{tpu_custom_call.1} parent=5 // pred_fallthru
        _
    $region6: #{tpu_custom_call.1} parent=1 // loop_footer
      %s19 = sadd.s32 1, %s15
    $region7: #{tpu_custom_call.1} parent=1 // loop_footer_branch
      %14 = sbr.rel target = $region3
    $region8: #{tpu_custom_call.1} parent=1 // loop_exit
      _
    %281 = vsyncpa [#allocation3], 1
    %s282 = scalar_lea.sflag [#allocation3], 1
    %283 = vsyncpa %s282, 1
    %284 = vsyncpa [#allocation6], 1
    %s285 = scalar_lea.sflag [#allocation6], 1
    %286 = vsyncpa %s285, 1
    %287 = vsyncpa [#allocation4], 1
    %s288 = scalar_lea.sflag [#allocation4], 1
    %289 = vsyncpa %s288, 1

</llo_original>
